<compile_context>
chip_gen: v7x
topology: tpu7x:2x2x1
jax: 0.10.0
libtpu: 0.0.40
codegen_flags: <defaults>
</compile_context>

<pallas_src>
import jax
import jax.numpy as jnp
from jax import lax
from jax.experimental import pallas as pl
from jax.experimental.pallas import tpu as pltpu


def _encoder_kernel(
    # inputs
    emb_ref,      # [S*Bp, E]   bf16, time-major (rows t*Bp .. t*Bp+Bp-1 = timestep t)
    wih_ref,      # [E, 6H]     bf16, columns = [fwd r|z|n , bwd r|z|n]
    bih_ref,      # [1, 6H]     f32
    whh_f_ref,    # [H, 3H]     bf16
    bhh_f_ref,    # [1, 3H]     f32
    whh_b_ref,    # [H, 3H]     bf16
    bhh_b_ref,    # [1, 3H]     f32
    wfc_ref,      # [2H, D]     bf16  (rows: fwd hidden part then bwd hidden part)
    bfc_ref,      # [1, D]      f32
    # outputs
    out_f_ref,    # [S*Bp, H]   f32   forward-direction GRU outputs
    out_b_ref,    # [S*Bp, H]   f32   backward-direction GRU outputs
    hid_ref,      # [Bp, D]     f32   tanh(fc(cat(h_f_final, h_b_final)))
    # scratch
    gi_ref,       # VMEM [S*Bp, 6H] f32 : precomputed input projections
):
    H3 = whh_f_ref.shape[1]
    H = H3 // 3
    Bp = hid_ref.shape[0]
    SB = emb_ref.shape[0]
    S = SB // Bp

    # ---- hoisted, fused input projection (both directions, all timesteps) ----
    # One big MXU call with M = S*Bp instead of 2*S tiny per-step matmuls.
    gi_ref[...] = (
        jnp.dot(emb_ref[...], wih_ref[...], preferred_element_type=jnp.float32)
        + bih_ref[...]
    )

    whh_f = whh_f_ref[...]
    whh_b = whh_b_ref[...]
    bhh_f = bhh_f_ref[...]
    bhh_b = bhh_b_ref[...]

    def gru_cell(gi, h, whh, bhh):
        # gi: [Bp, 3H] f32 (precomputed x @ W_ih + b_ih), h: [Bp, H] f32
        gh = jnp.dot(h.astype(whh.dtype), whh,
                     preferred_element_type=jnp.float32) + bhh        # [Bp, 3H]
        r = jax.nn.sigmoid(gi[:, 0:H] + gh[:, 0:H])
        z = jax.nn.sigmoid(gi[:, H:2 * H] + gh[:, H:2 * H])
        n = jnp.tanh(gi[:, 2 * H:3 * H] + r * gh[:, 2 * H:3 * H])
        return (1.0 - z) * n + z * h

    def step(t, carry):
        h_f, h_b = carry
        tb = S - 1 - t
        row_f = pl.multiple_of(t * Bp, Bp)
        row_b = pl.multiple_of(tb * Bp, Bp)

        gi_row_f = gi_ref[pl.ds(row_f, Bp), :]        # [Bp, 6H]
        gi_row_b = gi_ref[pl.ds(row_b, Bp), :]        # [Bp, 6H]
        gi_f = gi_row_f[:, 0:H3]                      # forward gates at time t
        gi_b = gi_row_b[:, H3:2 * H3]                 # backward gates at time S-1-t

        h_f = gru_cell(gi_f, h_f, whh_f, bhh_f)
        h_b = gru_cell(gi_b, h_b, whh_b, bhh_b)

        out_f_ref[pl.ds(row_f, Bp), :] = h_f
        out_b_ref[pl.ds(row_b, Bp), :] = h_b
        return h_f, h_b

    h0 = jnp.zeros((Bp, H), jnp.float32)
    h_f_fin, h_b_fin = lax.fori_loop(0, S, step, (h0, h0))

    # ---- decoder-init hidden: tanh(fc(cat(h_fwd_final, h_bwd_final))) ----
    h_cat = jnp.concatenate([h_f_fin, h_b_fin], axis=1)               # [Bp, 2H]
    hid_ref[...] = jnp.tanh(
        jnp.dot(h_cat.astype(wfc_ref.dtype), wfc_ref[...],
                preferred_element_type=jnp.float32) + bfc_ref[...]
    )


def encoder_forward(src, params):
    """src: [S, B] int32 token ids.  Returns (outputs [S, B, 2H], hidden [B, D])."""
    S, B = src.shape
    E = params["emb_table"].shape[1]
    H = params["whh_f"].shape[0]
    D = params["wfc"].shape[1]
    Bp = max(8, ((B + 7) // 8) * 8)   # pad batch to a full sublane tile

    # ---------------- wrapper glue / layout plumbing ----------------
    # embedding gather; TODO(synk): dropout treated as identity (eval-mode semantics)
    emb = jnp.take(params["emb_table"], src, axis=0)                  # [S, B, E] f32
    emb = emb.astype(jnp.bfloat16)
    emb = jnp.pad(emb, ((0, 0), (0, Bp - B), (0, 0)))                 # [S, Bp, E]
    emb2d = emb.reshape(S * Bp, E)                                    # time-major 2-D

    # fuse forward/backward input-to-hidden weights into one [E, 6H] matrix
    wih = jnp.concatenate([params["wih_f"], params["wih_b"]], axis=1).astype(jnp.bfloat16)
    bih = jnp.concatenate([params["bih_f"], params["bih_b"]], axis=1)  # f32 [1, 6H]
    whh_f = params["whh_f"].astype(jnp.bfloat16)
    whh_b = params["whh_b"].astype(jnp.bfloat16)
    wfc = params["wfc"].astype(jnp.bfloat16)

    vmem = pl.BlockSpec(memory_space=pltpu.MemorySpace.VMEM)
    kernel_inputs = (
        emb2d, wih, bih,
        whh_f, params["bhh_f"], whh_b, params["bhh_b"],
        wfc, params["bfc"],
    )

    out_f, out_b, hid = pl.pallas_call(
        _encoder_kernel,
        out_shape=(
            jax.ShapeDtypeStruct((S * Bp, H), jnp.float32),
            jax.ShapeDtypeStruct((S * Bp, H), jnp.float32),
            jax.ShapeDtypeStruct((Bp, D), jnp.float32),
        ),
        in_specs=[vmem] * len(kernel_inputs),
        out_specs=(vmem, vmem, vmem),
        scratch_shapes=[pltpu.VMEM((S * Bp, 6 * H), jnp.float32)],
    )(*kernel_inputs)

    # un-pad batch and assemble the PyTorch-layout outputs [S, B, 2H]
    outputs = jnp.concatenate(
        [out_f.reshape(S, Bp, H)[:, :B, :],
         out_b.reshape(S, Bp, H)[:, :B, :]], axis=-1)
    hidden = hid[:B, :]
    return outputs, hidden


def init_params(key, input_dim, emb_dim, enc_hid_dim, dec_hid_dim):
    ks = jax.random.split(key, 12)

    def w(k, shape, scale=0.1):
        return (scale * jax.random.normal(k, shape)).astype(jnp.float32)

    H3 = 3 * enc_hid_dim
    return {
        "emb_table": w(ks[0], (input_dim, emb_dim)),
        # forward-direction GRU (weights stored [in, out] so the kernel does x @ W)
        "wih_f": w(ks[1], (emb_dim, H3)),
        "bih_f": w(ks[2], (1, H3)),
        "whh_f": w(ks[3], (enc_hid_dim, H3)),
        "bhh_f": w(ks[4], (1, H3)),
        # backward-direction GRU
        "wih_b": w(ks[5], (emb_dim, H3)),
        "bih_b": w(ks[6], (1, H3)),
        "whh_b": w(ks[7], (enc_hid_dim, H3)),
        "bhh_b": w(ks[8], (1, H3)),
        # fc: cat(h_fwd, h_bwd) [2H] -> dec_hid
        "wfc": w(ks[9], (2 * enc_hid_dim, dec_hid_dim)),
        "bfc": w(ks[10], (1, dec_hid_dim)),
    }


if __name__ == "__main__":
    # small shapes consistent with the module's forward
    src_len = 12
    batch = 2
    input_dim = 40        # vocab size
    emb_dim = 32
    enc_hid_dim = 64      # outputs have 2*enc_hid_dim = 128 features (lane-dense)
    dec_hid_dim = 64

    key = jax.random.PRNGKey(0)
    kp, kt = jax.random.split(key)

    params = init_params(kp, input_dim, emb_dim, enc_hid_dim, dec_hid_dim)
    src = jax.random.randint(kt, (src_len, batch), 0, input_dim, dtype=jnp.int32)

    outputs, hidden = encoder_forward(src, params)
    jax.block_until_ready((outputs, hidden))

    assert outputs.shape == (src_len, batch, 2 * enc_hid_dim)
    assert hidden.shape == (batch, dec_hid_dim)
    assert bool(jnp.all(jnp.isfinite(outputs))) and bool(jnp.all(jnp.isfinite(hidden)))
    print("KERNEL_OK")
</pallas_src>

<mosaic_0001>
module attributes {stable_mosaic.version = 11 : i64} {
  func.func @_encoder_kernel(%arg0: memref<96x32xbf16, #tpu.memory_space<vmem>>, %arg1: memref<32x384xbf16, #tpu.memory_space<vmem>>, %arg2: memref<1x384xf32, #tpu.memory_space<vmem>>, %arg3: memref<64x192xbf16, #tpu.memory_space<vmem>>, %arg4: memref<1x192xf32, #tpu.memory_space<vmem>>, %arg5: memref<64x192xbf16, #tpu.memory_space<vmem>>, %arg6: memref<1x192xf32, #tpu.memory_space<vmem>>, %arg7: memref<128x64xbf16, #tpu.memory_space<vmem>>, %arg8: memref<1x64xf32, #tpu.memory_space<vmem>>, %arg9: memref<96x64xf32, #tpu.memory_space<vmem>>, %arg10: memref<96x64xf32, #tpu.memory_space<vmem>>, %arg11: memref<8x64xf32, #tpu.memory_space<vmem>>, %arg12: memref<96x384xf32, #tpu.memory_space<vmem>>) attributes {dimension_semantics = [], scalar_prefetch = 0 : i64, scratch_operands = 1 : i64, tpu.core_type = #tpu.core_type<tc>} {
    %c0 = arith.constant 0 : index
    %c0_0 = arith.constant 0 : index
    %0 = vector.load %arg0[%c0, %c0_0] : memref<96x32xbf16, #tpu.memory_space<vmem>>, vector<96x32xbf16>
    %c0_1 = arith.constant 0 : index
    %c0_2 = arith.constant 0 : index
    %1 = vector.load %arg1[%c0_1, %c0_2] : memref<32x384xbf16, #tpu.memory_space<vmem>>, vector<32x384xbf16>
    %cst = arith.constant dense<0.000000e+00> : vector<96x384xf32>
    %2 = tpu.matmul %0, %1, %cst {dimension_numbers = #tpu.dot_dimension_numbers<[1], [0], [0], [1], [0, 0, 1, 1], [], []>} : vector<96x32xbf16>, vector<32x384xbf16>, vector<96x384xf32> -> vector<96x384xf32>
    %c0_3 = arith.constant 0 : index
    %c0_4 = arith.constant 0 : index
    %3 = vector.load %arg2[%c0_3, %c0_4] : memref<1x384xf32, #tpu.memory_space<vmem>>, vector<1x384xf32>
    %4 = vector.broadcast %3 : vector<1x384xf32> to vector<96x384xf32>
    %5 = arith.addf %2, %4 : vector<96x384xf32>
    %c0_5 = arith.constant 0 : index
    %c0_6 = arith.constant 0 : index
    %6 = vector.load %arg12[%c0_5, %c0_6] : memref<96x384xf32, #tpu.memory_space<vmem>>, vector<96x384xf32>
    tpu.vector_store %arg12[%c0_5, %c0_6], %5 {strides = array<i32>} : memref<96x384xf32, #tpu.memory_space<vmem>>, vector<96x384xf32>,
    %c0_7 = arith.constant 0 : index
    %c0_8 = arith.constant 0 : index
    %7 = vector.load %arg3[%c0_7, %c0_8] : memref<64x192xbf16, #tpu.memory_space<vmem>>, vector<64x192xbf16>
    %c0_9 = arith.constant 0 : index
    %c0_10 = arith.constant 0 : index
    %8 = vector.load %arg5[%c0_9, %c0_10] : memref<64x192xbf16, #tpu.memory_space<vmem>>, vector<64x192xbf16>
    %c0_11 = arith.constant 0 : index
    %c0_12 = arith.constant 0 : index
    %9 = vector.load %arg4[%c0_11, %c0_12] : memref<1x192xf32, #tpu.memory_space<vmem>>, vector<1x192xf32>
    %c0_13 = arith.constant 0 : index
    %c0_14 = arith.constant 0 : index
    %10 = vector.load %arg6[%c0_13, %c0_14] : memref<1x192xf32, #tpu.memory_space<vmem>>, vector<1x192xf32>
    %cst_15 = arith.constant 0.000000e+00 : f32
    %11 = vector.broadcast %cst_15 : f32 to vector<8x64xf32>
    %c0_i32 = arith.constant 0 : i32
    %c12_i32 = arith.constant 12 : i32
    %12 = arith.addi %c0_i32, %c12_i32 : i32
    %c1_i32 = arith.constant 1 : i32
    %13:2 = scf.for %arg13 = %c0_i32 to %12 step %c1_i32 iter_args(%arg14 = %11, %arg15 = %11) -> (vector<8x64xf32>, vector<8x64xf32>)  : i32 {
      %c11_i32 = arith.constant 11 : i32
      %23 = arith.subi %c11_i32, %arg13 : i32
      %c8_i32 = arith.constant 8 : i32
      %24 = arith.muli %arg13, %c8_i32 : i32
      %25 = tpu.assume_multiple %24, 8 : i32
      %c8_i32_24 = arith.constant 8 : i32
      %26 = arith.muli %23, %c8_i32_24 : i32
      %27 = tpu.assume_multiple %26, 8 : i32
      %28 = arith.index_cast %25 : i32 to index
      %c0_25 = arith.constant 0 : index
      %29 = vector.load %arg12[%28, %c0_25] : memref<96x384xf32, #tpu.memory_space<vmem>>, vector<8x384xf32>
      %30 = arith.index_cast %27 : i32 to index
      %c0_26 = arith.constant 0 : index
      %31 = vector.load %arg12[%30, %c0_26] : memref<96x384xf32, #tpu.memory_space<vmem>>, vector<8x384xf32>
      %32 = vector.extract_strided_slice %29 {offsets = [0, 0], sizes = [8, 192], strides = [1, 1]} : vector<8x384xf32> to vector<8x192xf32>
      %33 = vector.extract_strided_slice %31 {offsets = [0, 192], sizes = [8, 192], strides = [1, 1]} : vector<8x384xf32> to vector<8x192xf32>
      %34 = arith.truncf %arg14 : vector<8x64xf32> to vector<8x64xbf16>
      %cst_27 = arith.constant dense<0.000000e+00> : vector<8x192xf32>
      %35 = tpu.matmul %34, %7, %cst_27 {dimension_numbers = #tpu.dot_dimension_numbers<[1], [0], [0], [1], [0, 0, 1, 1], [], []>} : vector<8x64xbf16>, vector<64x192xbf16>, vector<8x192xf32> -> vector<8x192xf32>
      %36 = vector.broadcast %9 : vector<1x192xf32> to vector<8x192xf32>
      %37 = arith.addf %35, %36 : vector<8x192xf32>
      %38 = vector.extract_strided_slice %32 {offsets = [0, 0], sizes = [8, 64], strides = [1, 1]} : vector<8x192xf32> to vector<8x64xf32>
      %39 = vector.extract_strided_slice %37 {offsets = [0, 0], sizes = [8, 64], strides = [1, 1]} : vector<8x192xf32> to vector<8x64xf32>
      %40 = arith.addf %38, %39 : vector<8x64xf32>
      %41 = arith.negf %40 : vector<8x64xf32>
      %42 = math.exp %41 : vector<8x64xf32>
      %cst_28 = arith.constant 1.000000e+00 : f32
      %43 = vector.broadcast %cst_28 : f32 to vector<8x64xf32>
      %44 = arith.addf %43, %42 : vector<8x64xf32>
      %45 = arith.divf %43, %44 : vector<8x64xf32>
      %46 = vector.extract_strided_slice %32 {offsets = [0, 64], sizes = [8, 64], strides = [1, 1]} : vector<8x192xf32> to vector<8x64xf32>
      %47 = vector.extract_strided_slice %37 {offsets = [0, 64], sizes = [8, 64], strides = [1, 1]} : vector<8x192xf32> to vector<8x64xf32>
      %48 = arith.addf %46, %47 : vector<8x64xf32>
      %49 = arith.negf %48 : vector<8x64xf32>
      %50 = math.exp %49 : vector<8x64xf32>
      %cst_29 = arith.constant 1.000000e+00 : f32
      %51 = vector.broadcast %cst_29 : f32 to vector<8x64xf32>
      %52 = arith.addf %51, %50 : vector<8x64xf32>
      %53 = arith.divf %51, %52 : vector<8x64xf32>
      %54 = vector.extract_strided_slice %32 {offsets = [0, 128], sizes = [8, 64], strides = [1, 1]} : vector<8x192xf32> to vector<8x64xf32>
      %55 = vector.extract_strided_slice %37 {offsets = [0, 128], sizes = [8, 64], strides = [1, 1]} : vector<8x192xf32> to vector<8x64xf32>
      %56 = arith.mulf %45, %55 : vector<8x64xf32>
      %57 = arith.addf %54, %56 : vector<8x64xf32>
      %58 = math.tanh %57 : vector<8x64xf32>
      %cst_30 = arith.constant 1.000000e+00 : f32
      %59 = vector.broadcast %cst_30 : f32 to vector<8x64xf32>
      %60 = arith.subf %59, %53 : vector<8x64xf32>
      %61 = arith.mulf %60, %58 : vector<8x64xf32>
      %62 = arith.mulf %53, %arg14 : vector<8x64xf32>
      %63 = arith.addf %61, %62 : vector<8x64xf32>
      %64 = arith.truncf %arg15 : vector<8x64xf32> to vector<8x64xbf16>
      %cst_31 = arith.constant dense<0.000000e+00> : vector<8x192xf32>
      %65 = tpu.matmul %64, %8, %cst_31 {dimension_numbers = #tpu.dot_dimension_numbers<[1], [0], [0], [1], [0, 0, 1, 1], [], []>} : vector<8x64xbf16>, vector<64x192xbf16>, vector<8x192xf32> -> vector<8x192xf32>
      %66 = vector.broadcast %10 : vector<1x192xf32> to vector<8x192xf32>
      %67 = arith.addf %65, %66 : vector<8x192xf32>
      %68 = vector.extract_strided_slice %33 {offsets = [0, 0], sizes = [8, 64], strides = [1, 1]} : vector<8x192xf32> to vector<8x64xf32>
      %69 = vector.extract_strided_slice %67 {offsets = [0, 0], sizes = [8, 64], strides = [1, 1]} : vector<8x192xf32> to vector<8x64xf32>
      %70 = arith.addf %68, %69 : vector<8x64xf32>
      %71 = arith.negf %70 : vector<8x64xf32>
      %72 = math.exp %71 : vector<8x64xf32>
      %cst_32 = arith.constant 1.000000e+00 : f32
      %73 = vector.broadcast %cst_32 : f32 to vector<8x64xf32>
      %74 = arith.addf %73, %72 : vector<8x64xf32>
      %75 = arith.divf %73, %74 : vector<8x64xf32>
      %76 = vector.extract_strided_slice %33 {offsets = [0, 64], sizes = [8, 64], strides = [1, 1]} : vector<8x192xf32> to vector<8x64xf32>
      %77 = vector.extract_strided_slice %67 {offsets = [0, 64], sizes = [8, 64], strides = [1, 1]} : vector<8x192xf32> to vector<8x64xf32>
      %78 = arith.addf %76, %77 : vector<8x64xf32>
      %79 = arith.negf %78 : vector<8x64xf32>
      %80 = math.exp %79 : vector<8x64xf32>
      %cst_33 = arith.constant 1.000000e+00 : f32
      %81 = vector.broadcast %cst_33 : f32 to vector<8x64xf32>
      %82 = arith.addf %81, %80 : vector<8x64xf32>
      %83 = arith.divf %81, %82 : vector<8x64xf32>
      %84 = vector.extract_strided_slice %33 {offsets = [0, 128], sizes = [8, 64], strides = [1, 1]} : vector<8x192xf32> to vector<8x64xf32>
      %85 = vector.extract_strided_slice %67 {offsets = [0, 128], sizes = [8, 64], strides = [1, 1]} : vector<8x192xf32> to vector<8x64xf32>
      %86 = arith.mulf %75, %85 : vector<8x64xf32>
      %87 = arith.addf %84, %86 : vector<8x64xf32>
      %88 = math.tanh %87 : vector<8x64xf32>
      %cst_34 = arith.constant 1.000000e+00 : f32
      %89 = vector.broadcast %cst_34 : f32 to vector<8x64xf32>
      %90 = arith.subf %89, %83 : vector<8x64xf32>
      %91 = arith.mulf %90, %88 : vector<8x64xf32>
      %92 = arith.mulf %83, %arg15 : vector<8x64xf32>
      %93 = arith.addf %91, %92 : vector<8x64xf32>
      %94 = arith.index_cast %25 : i32 to index
      %c0_35 = arith.constant 0 : index
      %95 = vector.load %arg9[%94, %c0_35] : memref<96x64xf32, #tpu.memory_space<vmem>>, vector<8x64xf32>
      tpu.vector_store %arg9[%94, %c0_35], %63 {strides = array<i32>} : memref<96x64xf32, #tpu.memory_space<vmem>>, vector<8x64xf32>,
      %96 = arith.index_cast %27 : i32 to index
      %c0_36 = arith.constant 0 : index
      %97 = vector.load %arg10[%96, %c0_36] : memref<96x64xf32, #tpu.memory_space<vmem>>, vector<8x64xf32>
      tpu.vector_store %arg10[%96, %c0_36], %93 {strides = array<i32>} : memref<96x64xf32, #tpu.memory_space<vmem>>, vector<8x64xf32>,
      scf.yield %63, %93 : vector<8x64xf32>, vector<8x64xf32>
    }
    %c12_i32_16 = arith.constant 12 : i32
    %14 = tpu.concatenate %13#0, %13#1 in 1 : vector<8x64xf32>, vector<8x64xf32> -> vector<8x128xf32>
    %15 = arith.truncf %14 : vector<8x128xf32> to vector<8x128xbf16>
    %c0_17 = arith.constant 0 : index
    %c0_18 = arith.constant 0 : index
    %16 = vector.load %arg7[%c0_17, %c0_18] : memref<128x64xbf16, #tpu.memory_space<vmem>>, vector<128x64xbf16>
    %cst_19 = arith.constant dense<0.000000e+00> : vector<8x64xf32>
    %17 = tpu.matmul %15, %16, %cst_19 {dimension_numbers = #tpu.dot_dimension_numbers<[1], [0], [0], [1], [0, 0, 1, 1], [], []>} : vector<8x128xbf16>, vector<128x64xbf16>, vector<8x64xf32> -> vector<8x64xf32>
    %c0_20 = arith.constant 0 : index
    %c0_21 = arith.constant 0 : index
    %18 = vector.load %arg8[%c0_20, %c0_21] : memref<1x64xf32, #tpu.memory_space<vmem>>, vector<1x64xf32>
    %19 = vector.broadcast %18 : vector<1x64xf32> to vector<8x64xf32>
    %20 = arith.addf %17, %19 : vector<8x64xf32>
    %21 = math.tanh %20 : vector<8x64xf32>
    %c0_22 = arith.constant 0 : index
    %c0_23 = arith.constant 0 : index
    %22 = vector.load %arg11[%c0_22, %c0_23] : memref<8x64xf32, #tpu.memory_space<vmem>>, vector<8x64xf32>
    tpu.vector_store %arg11[%c0_22, %c0_23], %21 {strides = array<i32>} : memref<8x64xf32, #tpu.memory_space<vmem>>, vector<8x64xf32>,
    return
  }
}

</mosaic_0001>

<llo_original>
// kernel: tpu_custom_call.1
$region0: #{tpu_custom_call.1}
  #allocation0 [shape = 'u32[]', space=smem, size = 0x4, offset = 0x4, fixed_abs, tag = 'smem constant byte address 0x4 - core index']
  #allocation1 [shape = 'u32[144,128]{1,0:T(1,128)}', space=vmem, size = 0x12000, scoped, tag = 'internal scratch']
  #allocation2 [shape = 'f32[96,384]{1,0:T(8,128)}', space=vmem, size = 0x24000, scoped, tag = 'scratch operand']
  %s0 = inlined_call_operand.vmem [shape: bf16[96,32], index: 0, kind: input, shape index: {}]
  %s1 = inlined_call_operand.hbm [shape: bf16[32,384], index: 1, kind: input, shape index: {}]
  %s2 = inlined_call_operand.vmem [shape: f32[1,384], index: 2, kind: input, shape index: {}]
  %s3 = inlined_call_operand.vmem [shape: bf16[64,192], index: 3, kind: input, shape index: {}]
  %s4 = inlined_call_operand.vmem [shape: f32[1,192], index: 4, kind: input, shape index: {}]
  %s5 = inlined_call_operand.vmem [shape: bf16[64,192], index: 5, kind: input, shape index: {}]
  %s6 = inlined_call_operand.vmem [shape: f32[1,192], index: 6, kind: input, shape index: {}]
  %s7 = inlined_call_operand.vmem [shape: bf16[128,64], index: 7, kind: input, shape index: {}]
  %s8 = inlined_call_operand.vmem [shape: f32[1,64], index: 8, kind: input, shape index: {}]
  %s9 = inlined_call_operand.vmem [shape: f32[96,64], index: 9, kind: output, shape index: {0}]
  %s10 = inlined_call_operand.vmem [shape: f32[96,64], index: 10, kind: output, shape index: {1}]
  %s11 = inlined_call_operand.hbm [shape: f32[8,64], index: 11, kind: output, shape index: {2}]
  %12 = xla_tuple %s9, %s10, %s11
  %s13 = sld [smem:[#allocation0]]
  $region73: #{tpu_custom_call.1} parent=0
    _
  %s15 = ssub.s32 1, %s13
  %s16 = scalar_select 0, %s15, %s13
  $region1: #{tpu_custom_call.1} parent=0
    #allocation3 [shape = 'u8[24576]{0}', space=vmem, size = 0x6000, scoped, tag = 'input window, operand 1, single buffered']
    #allocation4 [shape = 's32[1]{0}', space=sflag, size = 0x4, scoped, tag = 'scoped memory for tpu_custom_call.1']
    #allocation5 [shape = 's32[1]{0}', space=sflag, size = 0x4, scoped, tag = 'scoped memory for tpu_custom_call.1']
    #allocation6 [shape = 'u8[4096]{0}', space=vmem, size = 0x1000, scoped, tag = 'output window, operand 2, single buffered']
    %17 = vsyncpa [#allocation4], 0
    %18 = vsyncpa [#allocation5], 0
    // Predicated region
    $region2: #{tpu_custom_call.1} parent=1 // pred_check
      _
    $region3: #{tpu_custom_call.1} parent=1 // pred_check_branch
      %20 = sbr.rel (0) target = $region5
    $region4: #{tpu_custom_call.1} parent=1 // pred_region
      _
    $region5: #{tpu_custom_call.1} parent=1 // pred_fallthru
      _
    // Predicated region
    $region6: #{tpu_custom_call.1} parent=1 // pred_check
      _
    $region7: #{tpu_custom_call.1} parent=1 // pred_check_branch
      %22 = sbr.rel (0) target = $region9
    $region8: #{tpu_custom_call.1} parent=1 // pred_region
      %s24 = ssub.s32 768, 768
      %25 = vsyncadd [#allocation4], %s24
      %s26 = sshll.u32 [#allocation3], 4
      %s27 = int_to_ptr.vmem [resolvable:$true] %s26
      %32 = dma.hbm_to_vmem [thread:$0]  %s1, 768, %s27, [#allocation4], 192, 192, 12
    $region9: #{tpu_custom_call.1} parent=1 // pred_fallthru
      _
    // Predicated region
    $region10: #{tpu_custom_call.1} parent=1 // pred_check
      _
    $region11: #{tpu_custom_call.1} parent=1 // pred_check_branch
      %34 = sbr.rel (0) target = $region13
    $region12: #{tpu_custom_call.1} parent=1 // pred_region
      _
    $region13: #{tpu_custom_call.1} parent=1 // pred_fallthru
      _
    // Predicated region
    $region14: #{tpu_custom_call.1} parent=1 // pred_check
      _
    $region15: #{tpu_custom_call.1} parent=1 // pred_check_branch
      %36 = sbr.rel (0) target = $region17
    $region16: #{tpu_custom_call.1} parent=1 // pred_region
      _
    $region17: #{tpu_custom_call.1} parent=1 // pred_fallthru
      _
    // Predicated region
    $region18: #{tpu_custom_call.1} parent=1 // pred_check
      _
    $region19: #{tpu_custom_call.1} parent=1 // pred_check_branch
      %38 = sbr.rel (0) target = $region21
    $region20: #{tpu_custom_call.1} parent=1 // pred_region
      _
    $region21: #{tpu_custom_call.1} parent=1 // pred_fallthru
      _
    // Predicated region
    $region22: #{tpu_custom_call.1} parent=1 // pred_check
      _
    $region23: #{tpu_custom_call.1} parent=1 // pred_check_branch
      %40 = sbr.rel (0) target = $region25
    $region24: #{tpu_custom_call.1} parent=1 // pred_region
      _
    $region25: #{tpu_custom_call.1} parent=1 // pred_fallthru
      _
    // Predicated region
    $region26: #{tpu_custom_call.1} parent=1 // pred_check
      _
    $region27: #{tpu_custom_call.1} parent=1 // pred_check_branch
      %42 = sbr.rel (0) target = $region29
    $region28: #{tpu_custom_call.1} parent=1 // pred_region
      _
    $region29: #{tpu_custom_call.1} parent=1 // pred_fallthru
      _
    // Predicated region
    $region30: #{tpu_custom_call.1} parent=1 // pred_check
      _
    $region31: #{tpu_custom_call.1} parent=1 // pred_check_branch
      %44 = sbr.rel (0) target = $region33
    $region32: #{tpu_custom_call.1} parent=1 // pred_region
      _
    $region33: #{tpu_custom_call.1} parent=1 // pred_fallthru
      _
    // Predicated region
    $region34: #{tpu_custom_call.1} parent=1 // pred_check
      _
    $region35: #{tpu_custom_call.1} parent=1 // pred_check_branch
      %46 = sbr.rel (0) target = $region37
    $region36: #{tpu_custom_call.1} parent=1 // pred_region
      _
    $region37: #{tpu_custom_call.1} parent=1 // pred_fallthru
      _
    // Predicated region
    $region38: #{tpu_custom_call.1} parent=1 // pred_check
      _
    $region39: #{tpu_custom_call.1} parent=1 // pred_check_branch
      %48 = sbr.rel (0) target = $region41
    $region40: #{tpu_custom_call.1} parent=1 // pred_region
      %49 = dma.done [#allocation4], 768
    $region41: #{tpu_custom_call.1} parent=1 // pred_fallthru
      _
    %v51 = vld [vmem:[%s0] sm:$0xf]
    %v52 = vld [vmem:[%s0 + $0x4] sm:$0xf]
    %v53 = vld [vmem:[%s0 + $0x8] sm:$0xf]
    %v54 = vld [vmem:[%s0 + $0xc] sm:$0xf]
    %v55 = vld [vmem:[%s0 + $0x10] sm:$0xf]
    %v56 = vld [vmem:[%s0 + $0x14] sm:$0xf]
    %v57 = vld [vmem:[%s0 + $0x18] sm:$0xf]
    %v58 = vld [vmem:[%s0 + $0x1c] sm:$0xf]
    %v59 = vld [vmem:[%s0 + $0x20] sm:$0xf]
    %v60 = vld [vmem:[%s0 + $0x24] sm:$0xf]
    %v61 = vld [vmem:[%s0 + $0x28] sm:$0xf]
    %v62 = vld [vmem:[%s0 + $0x2c] sm:$0xf]
    %v63 = vld [vmem:[#allocation3] sm:$0xff]
    %v64 = vld [vmem:[#allocation3 + $0x8] sm:$0xf]
    %v65 = vld [vmem:[#allocation3 + $0xc] sm:$0xff]
    %v66 = vld [vmem:[#allocation3 + $0x14] sm:$0xf]
    %v67 = vld [vmem:[#allocation3 + $0x18] sm:$0xff]
    %v68 = vld [vmem:[#allocation3 + $0x20] sm:$0xf]
    %v69 = vld [vmem:[#allocation3 + $0x24] sm:$0xff]
    %v70 = vld [vmem:[#allocation3 + $0x2c] sm:$0xf]
    %v71 = vld [vmem:[%s2] sm:$0x7]
    %v73 = vlaneseq
    %v74 = vshrl.u32 %v73, 7
    %v75 = vsub.s32 0, %v74
    %v76 = vrot.slane %v71, %v75
    %v77 = vlaneseq
    %v78 = vshrl.u32 %v77, 7
    %v79 = vsub.s32 1, %v78
    %v80 = vrot.slane %v71, %v79
    %v81 = vlaneseq
    %v82 = vshrl.u32 %v81, 7
    %v83 = vsub.s32 2, %v82
    %v84 = vrot.slane %v71, %v83
    %v100 = vunpack.c.l.b16 %v51
    %v101 = vunpack.c.l.b16 %v52
    %v102 = vunpack.c.l.b16 %v53
    %v103 = vunpack.c.l.b16 %v54
    %v104 = vunpack.c.l.b16 %v55
    %v105 = vunpack.c.l.b16 %v56
    %v106 = vunpack.c.l.b16 %v57
    %v107 = vunpack.c.l.b16 %v58
    %v108 = vunpack.c.l.b16 %v59
    %v109 = vunpack.c.l.b16 %v60
    %v110 = vunpack.c.l.b16 %v61
    %v111 = vunpack.c.l.b16 %v62
    %v112 = vpack.c.b16 %v101, %v100
    %v113 = vpack.c.b16 %v103, %v102
    %v114 = vpack.c.b16 %v105, %v104
    %v115 = vpack.c.b16 %v107, %v106
    %v116 = vpack.c.b16 %v109, %v108
    %v117 = vpack.c.b16 %v111, %v110
    %v126 = vunpack.c.l.b16 %v63
    %v127 = vunpack.c.h.b16 %v63
    %v128 = vunpack.c.l.b16 %v64
    %v129 = vunpack.c.l.b16 %v65
    %v130 = vunpack.c.h.b16 %v65
    %v131 = vunpack.c.l.b16 %v66
    %v132 = vunpack.c.l.b16 %v67
    %v133 = vunpack.c.h.b16 %v67
    %v134 = vunpack.c.l.b16 %v68
    %v135 = vunpack.c.l.b16 %v69
    %v136 = vunpack.c.h.b16 %v69
    %v137 = vunpack.c.l.b16 %v70
    %v138 = vpack.c.b16 %v129, %v126
    %v139 = vpack.c.b16 %v130, %v127
    %v140 = vpack.c.b16 %v131, %v128
    %v141 = vpack.c.b16 %v135, %v132
    %v142 = vpack.c.b16 %v136, %v133
    %v143 = vpack.c.b16 %v137, %v134
    %vm150 = vcmask 261120
    %v152 = vsel %vm150, %v112, 0
    %v155 = vsel %vm150, %v113, 0
    %v158 = vsel %vm150, %v114, 0
    %v161 = vsel %vm150, %v115, 0
    %v164 = vsel %vm150, %v116, 0
    %v167 = vsel %vm150, %v117, 0
    %169 = vmatprep.subr.bf16.mxu0 %v139
    %170 = vmatpush1.bf16.msra.mxu0 %v138
    %171 = vmatprep.subr.bf16.mxu0 %v142
    %172 = vmatpush1.bf16.msra.mxu0 %v141
    %173 = vmatprep.subr.bf16.mxu0 0
    %174 = vmatpush1.bf16.msra.mxu0 0
    %175 = vmatprep.subr.bf16.mxu0 0
    %176 = vmatpush1.bf16.msra.mxu0 0
    %177 = vmatprep.subr.bf16.mxu0 0
    %178 = vmatpush1.bf16.msra.mxu0 0
    %179 = vmatprep.subr.bf16.mxu0 0
    %180 = vmatpush1.bf16.msra.mxu0 0
    %181 = vmatprep.subr.bf16.mxu0 0
    %182 = vmatpush1.bf16.msra.mxu0 0
    %183 = vmatprep.subr.bf16.mxu0 0
    %184 = vmatpush1.bf16.msra.mxu0 0
    %185 = vmatprep.subr.bf16.mxu0 0
    %186 = vmatpush1.bf16.msra.mxu0 0
    %187 = vmatprep.subr.bf16.mxu0 0
    %188 = vmatpush1.bf16.msra.mxu0 0
    %189 = vmatprep.subr.bf16.mxu0 0
    %190 = vmatpush1.bf16.msra.mxu0 0
    %191 = vmatprep.subr.bf16.mxu0 0
    %192 = vmatpush1.bf16.msra.mxu0 0
    %193 = vmatprep.subr.bf16.mxu0 0
    %194 = vmatpush1.bf16.msra.mxu0 0
    %195 = vmatprep.subr.bf16.mxu0 0
    %196 = vmatpush1.bf16.msra.mxu0 0
    %197 = vmatprep.subr.bf16.mxu0 0
    %198 = vmatpush1.bf16.msra.mxu0 0
    %199 = vmatprep.subr.bf16.mxu0 0
    %200 = vmatpush1.bf16.msra.mxu0 0
    %201 = vmatprep.mubr.bf16.mxu0 0
    %202 = vmatmul.mubr.bf16.gmra.mrb[0].mxu0 %v152
    %v203 = vpop.f32.mrb[0].mxu0
    %v204 = vadd.f32 %v76, %v203
    %v205 = vpop.f32.mrb[0].mxu0
    %v206 = vadd.f32 %v80, %v205
    %v207 = vpop.f32.mrb[0].mxu0
    %v208 = vadd.f32 %v76, %v207
    %v209 = vpop.f32.mrb[0].mxu0
    %v210 = vadd.f32 %v80, %v209
    %211 = vmatprep.mubr.bf16.mxu0 0
    %212 = vmatmul.mubr.bf16.gmra.mrb[0].mxu0 %v155
    %v213 = vpop.f32.mrb[0].mxu0
    %v214 = vadd.f32 %v76, %v213
    %v215 = vpop.f32.mrb[0].mxu0
    %v216 = vadd.f32 %v80, %v215
    %v217 = vpop.f32.mrb[0].mxu0
    %v218 = vadd.f32 %v76, %v217
    %v219 = vpop.f32.mrb[0].mxu0
    %v220 = vadd.f32 %v80, %v219
    %221 = vmatprep.mubr.bf16.mxu0 0
    %222 = vmatmul.mubr.bf16.gmra.mrb[0].mxu0 %v158
    %v223 = vpop.f32.mrb[0].mxu0
    %v224 = vadd.f32 %v76, %v223
    %v225 = vpop.f32.mrb[0].mxu0
    %v226 = vadd.f32 %v80, %v225
    %v227 = vpop.f32.mrb[0].mxu0
    %v228 = vadd.f32 %v76, %v227
    %v229 = vpop.f32.mrb[0].mxu0
    %v230 = vadd.f32 %v80, %v229
    %231 = vmatprep.mubr.bf16.mxu0 0
    %232 = vmatmul.mubr.bf16.gmra.mrb[0].mxu0 %v161
    %v233 = vpop.f32.mrb[0].mxu0
    %v234 = vadd.f32 %v76, %v233
    %v235 = vpop.f32.mrb[0].mxu0
    %v236 = vadd.f32 %v80, %v235
    %v237 = vpop.f32.mrb[0].mxu0
    %v238 = vadd.f32 %v76, %v237
    %v239 = vpop.f32.mrb[0].mxu0
    %v240 = vadd.f32 %v80, %v239
    %241 = vmatprep.mubr.bf16.mxu0 0
    %242 = vmatmul.mubr.bf16.gmra.mrb[0].mxu0 %v164
    %v243 = vpop.f32.mrb[0].mxu0
    %v244 = vadd.f32 %v76, %v243
    %v245 = vpop.f32.mrb[0].mxu0
    %v246 = vadd.f32 %v80, %v245
    %v247 = vpop.f32.mrb[0].mxu0
    %v248 = vadd.f32 %v76, %v247
    %v249 = vpop.f32.mrb[0].mxu0
    %v250 = vadd.f32 %v80, %v249
    %251 = vmatprep.mubr.bf16.mxu0 0
    %252 = vmatmul.mubr.bf16.gmra.mrb[0].mxu0 %v167
    %v253 = vpop.f32.mrb[0].mxu0
    %v254 = vadd.f32 %v76, %v253
    %v255 = vpop.f32.mrb[0].mxu0
    %v256 = vadd.f32 %v80, %v255
    %v257 = vpop.f32.mrb[0].mxu0
    %v258 = vadd.f32 %v76, %v257
    %v259 = vpop.f32.mrb[0].mxu0
    %v260 = vadd.f32 %v80, %v259
    %261 = vdwg.mxu0
    %262 = vmatprep.subr.bf16.mxu0 0
    %263 = vmatpush1.bf16.msra.mxu0 %v140
    %264 = vmatprep.subr.bf16.mxu0 0
    %265 = vmatpush1.bf16.msra.mxu0 %v143
    %266 = vmatprep.subr.bf16.mxu0 0
    %267 = vmatpush1.bf16.msra.mxu0 0
    %268 = vmatprep.subr.bf16.mxu0 0
    %269 = vmatpush1.bf16.msra.mxu0 0
    %270 = vmatprep.subr.bf16.mxu0 0
    %271 = vmatpush1.bf16.msra.mxu0 0
    %272 = vmatprep.subr.bf16.mxu0 0
    %273 = vmatpush1.bf16.msra.mxu0 0
    %274 = vmatprep.subr.bf16.mxu0 0
    %275 = vmatpush1.bf16.msra.mxu0 0
    %276 = vmatprep.subr.bf16.mxu0 0
    %277 = vmatpush1.bf16.msra.mxu0 0
    %278 = vmatprep.subr.bf16.mxu0 0
    %279 = vmatpush1.bf16.msra.mxu0 0
    %280 = vmatprep.subr.bf16.mxu0 0
    %281 = vmatpush1.bf16.msra.mxu0 0
    %282 = vmatprep.subr.bf16.mxu0 0
    %283 = vmatpush1.bf16.msra.mxu0 0
    %284 = vmatprep.subr.bf16.mxu0 0
    %285 = vmatpush1.bf16.msra.mxu0 0
    %286 = vmatprep.subr.bf16.mxu0 0
    %287 = vmatpush1.bf16.msra.mxu0 0
    %288 = vmatprep.subr.bf16.mxu0 0
    %289 = vmatpush1.bf16.msra.mxu0 0
    %290 = vmatprep.subr.bf16.mxu0 0
    %291 = vmatpush1.bf16.msra.mxu0 0
    %292 = vmatprep.subr.bf16.mxu0 0
    %293 = vmatpush1.bf16.msra.mxu0 0
    %294 = vmatprep.mubr.bf16.mxu0 0
    %295 = vmatmul.mubr.bf16.gmra.mrb[0].mxu0 %v152
    %v296 = vpop.f32.mrb[0].mxu0
    %v297 = vadd.f32 %v84, %v296
    %v298 = vpop.f32.mrb[0].mxu0
    %v299 = vpop.f32.mrb[0].mxu0
    %v300 = vadd.f32 %v84, %v299
    %v301 = vpop.f32.mrb[0].mxu0
    %302 = vmatprep.mubr.bf16.mxu0 0
    %303 = vmatmul.mubr.bf16.gmra.mrb[0].mxu0 %v155
    %v304 = vpop.f32.mrb[0].mxu0
    %v305 = vadd.f32 %v84, %v304
    %v306 = vpop.f32.mrb[0].mxu0
    %v307 = vpop.f32.mrb[0].mxu0
    %v308 = vadd.f32 %v84, %v307
    %v309 = vpop.f32.mrb[0].mxu0
    %310 = vmatprep.mubr.bf16.mxu0 0
    %311 = vmatmul.mubr.bf16.gmra.mrb[0].mxu0 %v158
    %v312 = vpop.f32.mrb[0].mxu0
    %v313 = vadd.f32 %v84, %v312
    %v314 = vpop.f32.mrb[0].mxu0
    %v315 = vpop.f32.mrb[0].mxu0
    %v316 = vadd.f32 %v84, %v315
    %v317 = vpop.f32.mrb[0].mxu0
    %318 = vmatprep.mubr.bf16.mxu0 0
    %319 = vmatmul.mubr.bf16.gmra.mrb[0].mxu0 %v161
    %v320 = vpop.f32.mrb[0].mxu0
    %v321 = vadd.f32 %v84, %v320
    %v322 = vpop.f32.mrb[0].mxu0
    %v323 = vpop.f32.mrb[0].mxu0
    %v324 = vadd.f32 %v84, %v323
    %v325 = vpop.f32.mrb[0].mxu0
    %326 = vmatprep.mubr.bf16.mxu0 0
    %327 = vmatmul.mubr.bf16.gmra.mrb[0].mxu0 %v164
    %v328 = vpop.f32.mrb[0].mxu0
    %v329 = vadd.f32 %v84, %v328
    %v330 = vpop.f32.mrb[0].mxu0
    %v331 = vpop.f32.mrb[0].mxu0
    %v332 = vadd.f32 %v84, %v331
    %v333 = vpop.f32.mrb[0].mxu0
    %334 = vmatprep.mubr.bf16.mxu0 0
    %335 = vmatmul.mubr.bf16.gmra.mrb[0].mxu0 %v167
    %v336 = vpop.f32.mrb[0].mxu0
    %v337 = vadd.f32 %v84, %v336
    %v338 = vpop.f32.mrb[0].mxu0
    %v339 = vpop.f32.mrb[0].mxu0
    %v340 = vadd.f32 %v84, %v339
    %v341 = vpop.f32.mrb[0].mxu0
    %342 = vdwg.mxu0
    %343 = vst [vmem:[#allocation2] sm:$0xff] %v204
    %344 = vst [vmem:[#allocation2 + $0x8] sm:$0xff] %v206
    %345 = vst [vmem:[#allocation2 + $0x10] sm:$0xff] %v297
    %346 = vst [vmem:[#allocation2 + $0x18] sm:$0xff] %v208
    %347 = vst [vmem:[#allocation2 + $0x20] sm:$0xff] %v210
    %348 = vst [vmem:[#allocation2 + $0x28] sm:$0xff] %v300
    %349 = vst [vmem:[#allocation2 + $0x30] sm:$0xff] %v214
    %350 = vst [vmem:[#allocation2 + $0x38] sm:$0xff] %v216
    %351 = vst [vmem:[#allocation2 + $0x40] sm:$0xff] %v305
    %352 = vst [vmem:[#allocation2 + $0x48] sm:$0xff] %v218
    %353 = vst [vmem:[#allocation2 + $0x50] sm:$0xff] %v220
    %354 = vst [vmem:[#allocation2 + $0x58] sm:$0xff] %v308
    %355 = vst [vmem:[#allocation2 + $0x60] sm:$0xff] %v224
    %356 = vst [vmem:[#allocation2 + $0x68] sm:$0xff] %v226
    %357 = vst [vmem:[#allocation2 + $0x70] sm:$0xff] %v313
    %358 = vst [vmem:[#allocation2 + $0x78] sm:$0xff] %v228
    %359 = vst [vmem:[#allocation2 + $0x80] sm:$0xff] %v230
    %360 = vst [vmem:[#allocation2 + $0x88] sm:$0xff] %v316
    %361 = vst [vmem:[#allocation2 + $0x90] sm:$0xff] %v234
    %362 = vst [vmem:[#allocation2 + $0x98] sm:$0xff] %v236
    %363 = vst [vmem:[#allocation2 + $0xa0] sm:$0xff] %v321
    %364 = vst [vmem:[#allocation2 + $0xa8] sm:$0xff] %v238
    %365 = vst [vmem:[#allocation2 + $0xb0] sm:$0xff] %v240
    %366 = vst [vmem:[#allocation2 + $0xb8] sm:$0xff] %v324
    %367 = vst [vmem:[#allocation2 + $0xc0] sm:$0xff] %v244
    %368 = vst [vmem:[#allocation2 + $0xc8] sm:$0xff] %v246
    %369 = vst [vmem:[#allocation2 + $0xd0] sm:$0xff] %v329
    %370 = vst [vmem:[#allocation2 + $0xd8] sm:$0xff] %v248
    %371 = vst [vmem:[#allocation2 + $0xe0] sm:$0xff] %v250
    %372 = vst [vmem:[#allocation2 + $0xe8] sm:$0xff] %v332
    %373 = vst [vmem:[#allocation2 + $0xf0] sm:$0xff] %v254
    %374 = vst [vmem:[#allocation2 + $0xf8] sm:$0xff] %v256
    %375 = vst [vmem:[#allocation2 + $0x100] sm:$0xff] %v337
    %376 = vst [vmem:[#allocation2 + $0x108] sm:$0xff] %v258
    %377 = vst [vmem:[#allocation2 + $0x110] sm:$0xff] %v260
    %378 = vst [vmem:[#allocation2 + $0x118] sm:$0xff] %v340
    %v379 = vld [vmem:[%s3] sm:$0xff]
    %v380 = vld [vmem:[%s3 + $0x8] sm:$0xff]
    %v381 = vld [vmem:[%s3 + $0x10] sm:$0xff]
    %v382 = vld [vmem:[%s3 + $0x18] sm:$0xff]
    %v383 = vld [vmem:[%s3 + $0x20] sm:$0xff]
    %v384 = vld [vmem:[%s3 + $0x28] sm:$0xff]
    %v385 = vld [vmem:[%s3 + $0x30] sm:$0xff]
    %v386 = vld [vmem:[%s3 + $0x38] sm:$0xff]
    %v387 = vld [vmem:[%s5] sm:$0xff]
    %v388 = vld [vmem:[%s5 + $0x8] sm:$0xff]
    %v389 = vld [vmem:[%s5 + $0x10] sm:$0xff]
    %v390 = vld [vmem:[%s5 + $0x18] sm:$0xff]
    %v391 = vld [vmem:[%s5 + $0x20] sm:$0xff]
    %v392 = vld [vmem:[%s5 + $0x28] sm:$0xff]
    %v393 = vld [vmem:[%s5 + $0x30] sm:$0xff]
    %v394 = vld [vmem:[%s5 + $0x38] sm:$0xff]
    %v395 = vld [vmem:[%s4] sm:$0x3]
    %v396 = vld [vmem:[%s6] sm:$0x3]
    loop: start=0, step=1, limit=12
    $region42: #{tpu_custom_call.1} parent=1 // loop_pre_header
      _
    $region43: #{tpu_custom_call.1} parent=1 // loop_header
      %s398 = sphi 0, %s402
      %p399 = scmp.ge.s32.totalorder %s398, 12
      %v403 = vphi 0.0, %v539
      %v404 = vphi 0.0, %v668
    $region44: #{tpu_custom_call.1} parent=1 // loop_header_branch
      %401 = sbr.rel (%p399) target = $region48
    $region45: #{tpu_custom_call.1} parent=1 // loop_body
      %s405 = ssub.s32 11, %s398
      %s406 = smul.u32 %s398, 8
      %s407 = smul.u32 %s405, 8
      %s408 = sshra.s32 %s406, 3
      %s409 = sand.u32 %s406, 7
      %s410 = smul.u32 %s408, 3
      %s411 = smul.addr %s410, 8
      %s412 = scalar_lea.vmem [#allocation2], %s411
      %v413 = vld [vmem:[%s412] sm:$0xff]
      %v414 = vld [vmem:[%s412 + $0x8] sm:$0xff]
      %s415 = sshra.s32 %s407, 3
      %s416 = sand.u32 %s407, 7
      %s417 = smul.u32 %s415, 3
      %s418 = smul.addr %s417, 8
      %s419 = scalar_lea.vmem [#allocation2], %s418
      %v420 = vld [vmem:[%s419 + $0x8] sm:$0xff]
      %v421 = vld [vmem:[%s419 + $0x10] sm:$0xff]
      %v422 = vpack.c.bf16 %v403, %v403
      %v424 = vlaneseq
      %v425 = vshrl.u32 %v424, 7
      %v426 = vsub.s32 0, %v425
      %v427 = vrot.slane %v395, %v426
      %v428 = vlaneseq
      %v429 = vshrl.u32 %v428, 7
      %v430 = vsub.s32 1, %v429
      %v431 = vrot.slane %v395, %v430
      %435 = vrot.lane.b32.xlu0 %v422, 64
      %v436 = vpop.permute.xlu0 %435
      %v445 = vunpack.c.l.b16 %v379
      %v446 = vunpack.c.h.b16 %v379
      %v447 = vunpack.c.l.b16 %v380
      %v448 = vunpack.c.h.b16 %v380
      %v449 = vunpack.c.l.b16 %v381
      %v450 = vunpack.c.h.b16 %v381
      %v451 = vunpack.c.l.b16 %v382
      %v452 = vunpack.c.h.b16 %v382
      %v453 = vunpack.c.l.b16 %v383
      %v454 = vunpack.c.h.b16 %v383
      %v455 = vunpack.c.l.b16 %v384
      %v456 = vunpack.c.h.b16 %v384
      %v457 = vunpack.c.l.b16 %v385
      %v458 = vunpack.c.h.b16 %v385
      %v459 = vunpack.c.l.b16 %v386
      %v460 = vunpack.c.h.b16 %v386
      %v461 = vpack.c.b16 %v447, %v445
      %v462 = vpack.c.b16 %v448, %v446
      %v463 = vpack.c.b16 %v451, %v449
      %v464 = vpack.c.b16 %v452, %v450
      %v465 = vpack.c.b16 %v455, %v453
      %v466 = vpack.c.b16 %v456, %v454
      %v467 = vpack.c.b16 %v459, %v457
      %v468 = vpack.c.b16 %v460, %v458
      %vm477 = vcmask 523264
      %v479 = vsel %vm477, %v436, 0
      %481 = vmatprep.subr.bf16.mxu0 %v462
      %482 = vmatpush1.bf16.msra.mxu0 %v461
      %483 = vmatprep.subr.bf16.mxu0 %v464
      %484 = vmatpush1.bf16.msra.mxu0 %v463
      %485 = vmatprep.subr.bf16.mxu0 %v466
      %486 = vmatpush1.bf16.msra.mxu0 %v465
      %487 = vmatprep.subr.bf16.mxu0 %v468
      %488 = vmatpush1.bf16.msra.mxu0 %v467
      %489 = vmatprep.subr.bf16.mxu0 0
      %490 = vmatpush1.bf16.msra.mxu0 0
      %491 = vmatprep.subr.bf16.mxu0 0
      %492 = vmatpush1.bf16.msra.mxu0 0
      %493 = vmatprep.subr.bf16.mxu0 0
      %494 = vmatpush1.bf16.msra.mxu0 0
      %495 = vmatprep.subr.bf16.mxu0 0
      %496 = vmatpush1.bf16.msra.mxu0 0
      %497 = vmatprep.subr.bf16.mxu0 0
      %498 = vmatpush1.bf16.msra.mxu0 0
      %499 = vmatprep.subr.bf16.mxu0 0
      %500 = vmatpush1.bf16.msra.mxu0 0
      %501 = vmatprep.subr.bf16.mxu0 0
      %502 = vmatpush1.bf16.msra.mxu0 0
      %503 = vmatprep.subr.bf16.mxu0 0
      %504 = vmatpush1.bf16.msra.mxu0 0
      %505 = vmatprep.subr.bf16.mxu0 0
      %506 = vmatpush1.bf16.msra.mxu0 0
      %507 = vmatprep.subr.bf16.mxu0 0
      %508 = vmatpush1.bf16.msra.mxu0 0
      %509 = vmatprep.subr.bf16.mxu0 0
      %510 = vmatpush1.bf16.msra.mxu0 0
      %511 = vmatprep.subr.bf16.mxu0 0
      %512 = vmatpush1.bf16.msra.mxu0 0
      %513 = vmatprep.mubr.bf16.mxu0 0
      %514 = vmatmul.mubr.bf16.gmra.mrb[0].mxu0 %v479
      %v515 = vpop.f32.mrb[0].mxu0
      %v516 = vadd.f32 %v427, %v515
      %v517 = vpop.f32.mrb[0].mxu0
      %v518 = vadd.f32 %v431, %v517
      %v519 = vpop.f32.mrb[0].mxu0
      %v520 = vpop.f32.mrb[0].mxu0
      %521 = vdwg.mxu0
      %v522 = vadd.f32 %v413, %v516
      %v523 = vxor.u32 %v522, 2147483648
      %v524 = vmul.f32 %v523, 1.442695
      %v525 = vpow.pop %v524
      %v526 = vadd.f32 %v525, 1.0
      %v527 = vrcp.pop %v526
      %v528 = vmul.f32 1.0, %v527
      %v529 = vmul.f32 %v528, %v518
      %v530 = vadd.f32 %v414, %v529
      %v531 = vtanh.pop %v530
      %v532 = vsub.f32 1.0, %v528
      %534 = vrot.lane.b32.xlu0 %v531, 64
      %v535 = vpop.permute.xlu0 %534
      %v537 = vmul.f32 %v532, %v535
      %v538 = vmul.f32 %v528, %v403
      %v539 = vadd.f32 %v537, %v538
      %v540 = vpack.c.bf16 %v404, %v404
      %v542 = vlaneseq
      %v543 = vshrl.u32 %v542, 7
      %v544 = vsub.s32 0, %v543
      %v545 = vrot.slane %v396, %v544
      %v546 = vlaneseq
      %v547 = vshrl.u32 %v546, 7
      %v548 = vsub.s32 1, %v547
      %v549 = vrot.slane %v396, %v548
      %v560 = vunpack.c.l.b16 %v387
      %v561 = vunpack.c.h.b16 %v387
      %v562 = vunpack.c.l.b16 %v388
      %v563 = vunpack.c.h.b16 %v388
      %v564 = vunpack.c.l.b16 %v389
      %v565 = vunpack.c.h.b16 %v389
      %v566 = vunpack.c.l.b16 %v390
      %v567 = vunpack.c.h.b16 %v390
      %v568 = vunpack.c.l.b16 %v391
      %v569 = vunpack.c.h.b16 %v391
      %v570 = vunpack.c.l.b16 %v392
      %v571 = vunpack.c.h.b16 %v392
      %v572 = vunpack.c.l.b16 %v393
      %v573 = vunpack.c.h.b16 %v393
      %v574 = vunpack.c.l.b16 %v394
      %v575 = vunpack.c.h.b16 %v394
      %v576 = vpack.c.b16 %v562, %v560
      %v577 = vpack.c.b16 %v563, %v561
      %v578 = vpack.c.b16 %v566, %v564
      %v579 = vpack.c.b16 %v567, %v565
      %v580 = vpack.c.b16 %v570, %v568
      %v581 = vpack.c.b16 %v571, %v569
      %v582 = vpack.c.b16 %v574, %v572
      %v583 = vpack.c.b16 %v575, %v573
      %v593 = vsel %vm477, %v540, 0
      %595 = vmatprep.subr.bf16.mxu0 %v577
      %596 = vmatpush1.bf16.msra.mxu0 %v576
      %597 = vmatprep.subr.bf16.mxu0 %v579
      %598 = vmatpush1.bf16.msra.mxu0 %v578
      %599 = vmatprep.subr.bf16.mxu0 %v581
      %600 = vmatpush1.bf16.msra.mxu0 %v580
      %601 = vmatprep.subr.bf16.mxu0 %v583
      %602 = vmatpush1.bf16.msra.mxu0 %v582
      %603 = vmatprep.subr.bf16.mxu0 0
      %604 = vmatpush1.bf16.msra.mxu0 0
      %605 = vmatprep.subr.bf16.mxu0 0
      %606 = vmatpush1.bf16.msra.mxu0 0
      %607 = vmatprep.subr.bf16.mxu0 0
      %608 = vmatpush1.bf16.msra.mxu0 0
      %609 = vmatprep.subr.bf16.mxu0 0
      %610 = vmatpush1.bf16.msra.mxu0 0
      %611 = vmatprep.subr.bf16.mxu0 0
      %612 = vmatpush1.bf16.msra.mxu0 0
      %613 = vmatprep.subr.bf16.mxu0 0
      %614 = vmatpush1.bf16.msra.mxu0 0
      %615 = vmatprep.subr.bf16.mxu0 0
      %616 = vmatpush1.bf16.msra.mxu0 0
      %617 = vmatprep.subr.bf16.mxu0 0
      %618 = vmatpush1.bf16.msra.mxu0 0
      %619 = vmatprep.subr.bf16.mxu0 0
      %620 = vmatpush1.bf16.msra.mxu0 0
      %621 = vmatprep.subr.bf16.mxu0 0
      %622 = vmatpush1.bf16.msra.mxu0 0
      %623 = vmatprep.subr.bf16.mxu0 0
      %624 = vmatpush1.bf16.msra.mxu0 0
      %625 = vmatprep.subr.bf16.mxu0 0
      %626 = vmatpush1.bf16.msra.mxu0 0
      %627 = vmatprep.mubr.bf16.mxu0 0
      %628 = vmatmul.mubr.bf16.gmra.mrb[0].mxu0 %v593
      %v629 = vpop.f32.mrb[0].mxu0
      %v630 = vadd.f32 %v545, %v629
      %v631 = vpop.f32.mrb[0].mxu0
      %v632 = vadd.f32 %v549, %v631
      %v633 = vpop.f32.mrb[0].mxu0
      %v634 = vpop.f32.mrb[0].mxu0
      %635 = vdwg.mxu0
      %637 = vrot.lane.b32.xlu0 %v630, 64
      %v638 = vpop.permute.xlu0 %637
      %v640 = vadd.f32 %v420, %v638
      %v641 = vxor.u32 %v640, 2147483648
      %v642 = vmul.f32 %v641, 1.442695
      %v643 = vpow.pop %v642
      %v644 = vadd.f32 %v643, 1.0
      %v645 = vrcp.pop %v644
      %v646 = vmul.f32 1.0, %v645
      %v647 = vadd.f32 %v421, %v638
      %v648 = vxor.u32 %v647, 2147483648
      %v649 = vmul.f32 %v648, 1.442695
      %v650 = vpow.pop %v649
      %v651 = vadd.f32 %v650, 1.0
      %v652 = vrcp.pop %v651
      %v653 = vmul.f32 1.0, %v652
      %655 = vrot.lane.b32.xlu0 %v632, 64
      %v656 = vpop.permute.xlu0 %655
      %v658 = vmul.f32 %v646, %v656
      %v659 = vadd.f32 %v421, %v658
      %v660 = vtanh.pop %v659
      %v661 = vsub.f32 1.0, %v653
      %663 = vrot.lane.b32.xlu0 %v660, 64
      %v664 = vpop.permute.xlu0 %663
      %v666 = vmul.f32 %v661, %v664
      %v667 = vmul.f32 %v653, %v404
      %v668 = vadd.f32 %v666, %v667
      %670 = vrot.lane.b32.xlu0 %v539, 64
      %v671 = vpop.permute.xlu0 %670
      %s673 = scalar_lea.vmem %s9, %s406
      %674 = vst.msk [vmem:[%s673] sm:$0xff] %vm477, %v671
      %s675 = scalar_lea.vmem %s10, %s407
      %676 = vst.msk [vmem:[%s675] sm:$0xff] %vm477, %v668
    $region46: #{tpu_custom_call.1} parent=1 // loop_footer
      %s402 = sadd.s32 1, %s398
    $region47: #{tpu_custom_call.1} parent=1 // loop_footer_branch
      %397 = sbr.rel target = $region43
    $region48: #{tpu_custom_call.1} parent=1 // loop_exit
      _
    %678 = vrot.lane.b32.xlu0 %v403, 64
    %v679 = vpop.permute.xlu0 %678
    %682 = vrot.lane.b32.xlu0 %v404, 64
    %v683 = vpop.permute.xlu0 %682
    %vm685 = vcmask 523264
    %v686 = vsel %vm685, %v679, %v683
    %v687 = vpack.c.bf16 %v686, %v686
    %v688 = vld [vmem:[%s7] sm:$0xf]
    %v689 = vld [vmem:[%s7 + $0x4] sm:$0xf]
    %v690 = vld [vmem:[%s7 + $0x8] sm:$0xf]
    %v691 = vld [vmem:[%s7 + $0xc] sm:$0xf]
    %v692 = vld [vmem:[%s7 + $0x10] sm:$0xf]
    %v693 = vld [vmem:[%s7 + $0x14] sm:$0xf]
    %v694 = vld [vmem:[%s7 + $0x18] sm:$0xf]
    %v695 = vld [vmem:[%s7 + $0x1c] sm:$0xf]
    %v696 = vld [vmem:[%s7 + $0x20] sm:$0xf]
    %v697 = vld [vmem:[%s7 + $0x24] sm:$0xf]
    %v698 = vld [vmem:[%s7 + $0x28] sm:$0xf]
    %v699 = vld [vmem:[%s7 + $0x2c] sm:$0xf]
    %v700 = vld [vmem:[%s7 + $0x30] sm:$0xf]
    %v701 = vld [vmem:[%s7 + $0x34] sm:$0xf]
    %v702 = vld [vmem:[%s7 + $0x38] sm:$0xf]
    %v703 = vld [vmem:[%s7 + $0x3c] sm:$0xf]
    %v704 = vld [vmem:[%s8] sm:$0x1]
    %v706 = vlaneseq
    %v707 = vshrl.u32 %v706, 7
    %v708 = vsub.s32 0, %v707
    %v709 = vrot.slane %v704, %v708
    %v727 = vunpack.c.l.b16 %v688
    %v728 = vunpack.c.l.b16 %v689
    %v729 = vunpack.c.l.b16 %v690
    %v730 = vunpack.c.l.b16 %v691
    %v731 = vunpack.c.l.b16 %v692
    %v732 = vunpack.c.l.b16 %v693
    %v733 = vunpack.c.l.b16 %v694
    %v734 = vunpack.c.l.b16 %v695
    %v735 = vunpack.c.l.b16 %v696
    %v736 = vunpack.c.l.b16 %v697
    %v737 = vunpack.c.l.b16 %v698
    %v738 = vunpack.c.l.b16 %v699
    %v739 = vunpack.c.l.b16 %v700
    %v740 = vunpack.c.l.b16 %v701
    %v741 = vunpack.c.l.b16 %v702
    %v742 = vunpack.c.l.b16 %v703
    %v743 = vpack.c.b16 %v728, %v727
    %v744 = vpack.c.b16 %v730, %v729
    %v745 = vpack.c.b16 %v732, %v731
    %v746 = vpack.c.b16 %v734, %v733
    %v747 = vpack.c.b16 %v736, %v735
    %v748 = vpack.c.b16 %v738, %v737
    %v749 = vpack.c.b16 %v740, %v739
    %v750 = vpack.c.b16 %v742, %v741
    %759 = vmatprep.subr.bf16.mxu0 0
    %760 = vmatpush1.bf16.msra.mxu0 %v743
    %761 = vmatprep.subr.bf16.mxu0 0
    %762 = vmatpush1.bf16.msra.mxu0 %v744
    %763 = vmatprep.subr.bf16.mxu0 0
    %764 = vmatpush1.bf16.msra.mxu0 %v745
    %765 = vmatprep.subr.bf16.mxu0 0
    %766 = vmatpush1.bf16.msra.mxu0 %v746
    %767 = vmatprep.subr.bf16.mxu0 0
    %768 = vmatpush1.bf16.msra.mxu0 %v747
    %769 = vmatprep.subr.bf16.mxu0 0
    %770 = vmatpush1.bf16.msra.mxu0 %v748
    %771 = vmatprep.subr.bf16.mxu0 0
    %772 = vmatpush1.bf16.msra.mxu0 %v749
    %773 = vmatprep.subr.bf16.mxu0 0
    %774 = vmatpush1.bf16.msra.mxu0 %v750
    %775 = vmatprep.subr.bf16.mxu0 0
    %776 = vmatpush1.bf16.msra.mxu0 0
    %777 = vmatprep.subr.bf16.mxu0 0
    %778 = vmatpush1.bf16.msra.mxu0 0
    %779 = vmatprep.subr.bf16.mxu0 0
    %780 = vmatpush1.bf16.msra.mxu0 0
    %781 = vmatprep.subr.bf16.mxu0 0
    %782 = vmatpush1.bf16.msra.mxu0 0
    %783 = vmatprep.subr.bf16.mxu0 0
    %784 = vmatpush1.bf16.msra.mxu0 0
    %785 = vmatprep.subr.bf16.mxu0 0
    %786 = vmatpush1.bf16.msra.mxu0 0
    %787 = vmatprep.subr.bf16.mxu0 0
    %788 = vmatpush1.bf16.msra.mxu0 0
    %789 = vmatprep.subr.bf16.mxu0 0
    %790 = vmatpush1.bf16.msra.mxu0 0
    %791 = vmatprep.mubr.bf16.mxu0 0
    %792 = vmatmul.mubr.bf16.gmra.mrb[0].mxu0 %v687
    %v793 = vpop.f32.mrb[0].mxu0
    %v794 = vadd.f32 %v709, %v793
    %v795 = vpop.f32.mrb[0].mxu0
    %v796 = vpop.f32.mrb[0].mxu0
    %v797 = vpop.f32.mrb[0].mxu0
    %798 = vdwg.mxu0
    %v799 = vtanh.pop %v794
    %800 = vst.msk [vmem:[#allocation6] sm:$0xff] %vm685, %v799
    // Predicated region
    $region49: #{tpu_custom_call.1} parent=1 // pred_check
      _
    $region50: #{tpu_custom_call.1} parent=1 // pred_check_branch
      %802 = sbr.rel (0) target = $region52
    $region51: #{tpu_custom_call.1} parent=1 // pred_region
      _
    $region52: #{tpu_custom_call.1} parent=1 // pred_fallthru
      _
    // Predicated region
    $region53: #{tpu_custom_call.1} parent=1 // pred_check
      _
    $region54: #{tpu_custom_call.1} parent=1 // pred_check_branch
      %804 = sbr.rel (0) target = $region56
    $region55: #{tpu_custom_call.1} parent=1 // pred_region
      _
    $region56: #{tpu_custom_call.1} parent=1 // pred_fallthru
      _
    // Predicated region
    $region57: #{tpu_custom_call.1} parent=1 // pred_check
      _
    $region58: #{tpu_custom_call.1} parent=1 // pred_check_branch
      %806 = sbr.rel (0) target = $region60
    $region59: #{tpu_custom_call.1} parent=1 // pred_region
      %s808 = ssub.s32 128, 128
      %809 = vsyncadd [#allocation5], %s808
      %s811 = sshll.u32 [#allocation6], 4
      %s812 = int_to_ptr.vmem [resolvable:$true] %s811
      %814 = dma.vmem_to_hbm [thread:$0]  %s812, 128, %s11, [#allocation5]
    $region60: #{tpu_custom_call.1} parent=1 // pred_fallthru
      _
    // Predicated region
    $region61: #{tpu_custom_call.1} parent=1 // pred_check
      _
    $region62: #{tpu_custom_call.1} parent=1 // pred_check_branch
      %816 = sbr.rel (0) target = $region64
    $region63: #{tpu_custom_call.1} parent=1 // pred_region
      _
    $region64: #{tpu_custom_call.1} parent=1 // pred_fallthru
      _
    // Predicated region
    $region65: #{tpu_custom_call.1} parent=1 // pred_check
      _
    $region66: #{tpu_custom_call.1} parent=1 // pred_check_branch
      %818 = sbr.rel (0) target = $region68
    $region67: #{tpu_custom_call.1} parent=1 // pred_region
      _
    $region68: #{tpu_custom_call.1} parent=1 // pred_fallthru
      _
    // Predicated region
    $region69: #{tpu_custom_call.1} parent=1 // pred_check
      _
    $region70: #{tpu_custom_call.1} parent=1 // pred_check_branch
      %820 = sbr.rel (0) target = $region72
    $region71: #{tpu_custom_call.1} parent=1 // pred_region
      %821 = dma.done [#allocation5], 128
    $region72: #{tpu_custom_call.1} parent=1 // pred_fallthru
      _
    %822 = vsyncpa [#allocation4], 1
    %823 = vsyncpa [#allocation5], 1

</llo_original>
